<compile_context>
chip_gen: v7x
topology: tpu7x:2x2x1
jax: 0.10.0
libtpu: 0.0.40
codegen_flags: <defaults>
</compile_context>

<pallas_src>
import jax
import jax.numpy as jnp
from jax.experimental import pallas as pl
from jax.experimental.pallas import tpu as pltpu


def _graph_reasoning_kernel(x_ref, wq_ref, wk_ref, wg_ref,
                            bq_ref, bk_ref, bg_ref, o_ref):
    bb, l, d = x_ref.shape
    x = x_ref[...]                                   # (Bb, L, D) f32
    # Fold batch into the MXU M dim; reshape is free when L%8==0 and D%128==0.
    xf = x.reshape(bb * l, d).astype(jnp.bfloat16)   # (Bb*L, D) bf16
    x_b = x.astype(jnp.bfloat16)                     # (Bb, L, D) bf16

    # Q / K projections: bf16 operands, f32 accumulation, f32 bias add.
    q = jnp.dot(xf, wq_ref[...], preferred_element_type=jnp.float32) + bq_ref[...]
    k = jnp.dot(xf, wk_ref[...], preferred_element_type=jnp.float32) + bk_ref[...]
    q = q.reshape(bb, l, d).astype(jnp.bfloat16)
    k = k.reshape(bb, l, d).astype(jnp.bfloat16)

    # Edge scores: contract the feature dim directly (q @ k^T per batch), f32 acc.
    s = jnp.einsum('bld,bmd->blm', q, k, preferred_element_type=jnp.float32)

    # Row softmax in f32 (max-subtracted). Approximate reciprocal on the EUP
    # slot, then one Newton-Raphson step (VPU) to recover ~f32 precision.
    s_max = jnp.max(s, axis=-1, keepdims=True)
    p = jnp.exp(s - s_max)
    denom = jnp.sum(p, axis=-1, keepdims=True)
    inv = pl.reciprocal(denom, approx=True)
    inv = inv * (2.0 - denom * inv)
    p = p * inv

    # Message passing over the fully connected graph (bf16 operands, f32 acc).
    sgr = jnp.einsum('blm,bmd->bld', p.astype(jnp.bfloat16), x_b,
                     preferred_element_type=jnp.float32)

    # Output projection + ReLU on the folded (Bb*L, D) view.
    out = jnp.dot(sgr.reshape(bb * l, d).astype(jnp.bfloat16), wg_ref[...],
                  preferred_element_type=jnp.float32) + bg_ref[...]
    o_ref[...] = jnp.maximum(out, 0.0).reshape(bb, l, d)


def _choose_block_b(B, L, D, *, target_rows=1024, vmem_budget_bytes=40 << 20):
    """Pick the batch block size Bb.

    - Target Bb*L ~ target_rows so each grid step feeds the MXU a tall LHS and
      the ~0.35us per-step overhead is amortized.
    - Cap by an estimated per-step VMEM footprint (double-buffered f32 in/out
      blocks + in-kernel temporaries) so the choice is safe on v7x (64 MiB).
    - Keep at least two grid steps when B >= 2 so the "parallel" batch axis can
      be sharded across v7x's two TensorCores.
    """
    per_b = 56 * L * D + 8 * L * L          # rough bytes of VMEM per batch element
    bb = min(B,
             max(1, target_rows // max(L, 1)),
             max(1, vmem_budget_bytes // per_b))
    bb = max(1, bb)
    if B >= 2 and bb > (B + 1) // 2:
        bb = (B + 1) // 2
    return int(bb)


def prepare_graph_reasoning_params(wq, bq, wk, bk, wg, bg):
    """One-time parameter repack (do this at load time, NOT per forward call):
    PyTorch-style (out, in) weights -> (in, out) bf16 MXU operands, biases ->
    (1, D) f32 rows."""
    D = wq.shape[0]
    return dict(
        wq_t=jnp.asarray(wq, jnp.float32).T.astype(jnp.bfloat16),
        wk_t=jnp.asarray(wk, jnp.float32).T.astype(jnp.bfloat16),
        wg_t=jnp.asarray(wg, jnp.float32).T.astype(jnp.bfloat16),
        bq=jnp.asarray(bq, jnp.float32).reshape(1, D),
        bk=jnp.asarray(bk, jnp.float32).reshape(1, D),
        bg=jnp.asarray(bg, jnp.float32).reshape(1, D),
    )


def graph_reasoning(sim_emb, params, *, block_b=None):
    """sim_emb: (B, L, D) float32. params: output of prepare_graph_reasoning_params.
    Returns (B, L, D) float32."""
    B, L, D = sim_emb.shape
    sim_emb = sim_emb.astype(jnp.float32)

    Bb = _choose_block_b(B, L, D) if block_b is None else block_b
    grid = (pl.cdiv(B, Bb),)

    x_spec = pl.BlockSpec((Bb, L, D), lambda b: (b, 0, 0))
    w_spec = pl.BlockSpec((D, D), lambda b: (0, 0))
    b_spec = pl.BlockSpec((1, D), lambda b: (0, 0))

    flops = B * (6 * L * D * D + 4 * L * L * D)
    transcendentals = B * (L * L + L)
    bytes_accessed = 4 * 2 * B * L * D + 2 * 3 * D * D + 4 * 3 * D

    return pl.pallas_call(
        _graph_reasoning_kernel,
        out_shape=jax.ShapeDtypeStruct((B, L, D), jnp.float32),
        grid_spec=pltpu.PrefetchScalarGridSpec(
            num_scalar_prefetch=0,
            grid=grid,
            in_specs=[x_spec, w_spec, w_spec, w_spec, b_spec, b_spec, b_spec],
            out_specs=x_spec,
        ),
        compiler_params=pltpu.CompilerParams(
            dimension_semantics=("parallel",),
            vmem_limit_bytes=48 * 1024 * 1024,
        ),
        cost_estimate=pl.CostEstimate(
            flops=flops,
            transcendentals=transcendentals,
            bytes_accessed=bytes_accessed),
    )(sim_emb, params['wq_t'], params['wk_t'], params['wg_t'],
      params['bq'], params['bk'], params['bg'])


def init_graph_reasoning_params(key, sim_dim):
    """Mirror the PyTorch init: Linear weights ~ U(-r, r), biases = 0,
    r = sqrt(6) / sqrt(in_features + out_features)."""
    r = jnp.sqrt(6.0) / jnp.sqrt(jnp.asarray(2 * sim_dim, jnp.float32))
    kq, kk, kg = jax.random.split(key, 3)
    wq = jax.random.uniform(kq, (sim_dim, sim_dim), jnp.float32, -r, r)
    wk = jax.random.uniform(kk, (sim_dim, sim_dim), jnp.float32, -r, r)
    wg = jax.random.uniform(kg, (sim_dim, sim_dim), jnp.float32, -r, r)
    bq = jnp.zeros((sim_dim,), jnp.float32)
    bk = jnp.zeros((sim_dim,), jnp.float32)
    bg = jnp.zeros((sim_dim,), jnp.float32)
    return wq, bq, wk, bk, wg, bg


def _reference(sim_emb, wq, bq, wk, bk, wg, bg):
    q = sim_emb @ wq.T + bq
    k = sim_emb @ wk.T + bk
    e = jax.nn.softmax(jnp.einsum("bld,bmd->blm", q, k), axis=-1)
    sgr = jnp.einsum("blm,bmd->bld", e, sim_emb)
    return jax.nn.relu(sgr @ wg.T + bg)


if __name__ == "__main__":
    key = jax.random.PRNGKey(0)
    # (B, L+1 graph nodes, sim_dim). D=128 is the lane-aligned small config
    # (intended sim_dim is 256); D=32 exercises the sub-128-lane path.
    for (B, L, D) in [(4, 8, 128), (2, 8, 32)]:
        key, k_x, k_p = jax.random.split(key, 3)
        sim_emb = 0.5 * jax.random.normal(k_x, (B, L, D), jnp.float32)
        raw_params = init_graph_reasoning_params(k_p, D)
        prepped = prepare_graph_reasoning_params(*raw_params)

        out = graph_reasoning(sim_emb, prepped)
        out = jax.block_until_ready(out)

        ref = _reference(sim_emb, *raw_params)
        assert out.shape == (B, L, D)
        # Tolerance reflects bf16 MXU operands (f32 accumulation); the softmax
        # reciprocal itself is refined to ~f32 accuracy via one Newton step.
        assert jnp.allclose(out, ref, atol=5e-2, rtol=5e-2), \
            f"mismatch vs reference at shape {(B, L, D)}"
    print("KERNEL_OK")
</pallas_src>

<mosaic_0001>
module attributes {stable_mosaic.version = 11 : i64} {
  func.func @_graph_reasoning_kernel(%arg0: i32, %arg1: memref<2x8x128xf32, #tpu.memory_space<vmem>>, %arg2: memref<128x128xbf16, #tpu.memory_space<vmem>>, %arg3: memref<128x128xbf16, #tpu.memory_space<vmem>>, %arg4: memref<128x128xbf16, #tpu.memory_space<vmem>>, %arg5: memref<1x128xf32, #tpu.memory_space<vmem>>, %arg6: memref<1x128xf32, #tpu.memory_space<vmem>>, %arg7: memref<1x128xf32, #tpu.memory_space<vmem>>, %arg8: memref<2x8x128xf32, #tpu.memory_space<vmem>>) attributes {dimension_semantics = [#tpu.dimension_semantics<parallel>], iteration_bounds = array<i64: 2>, scalar_prefetch = 0 : i64, scratch_operands = 0 : i64, tpu.core_type = #tpu.core_type<tc>, window_params = [{transform_indices = @transform_0, window_bounds = array<i64: 2, 8, 128>}, {pipeline_mode = #tpu.pipeline_mode<synchronous>, transform_indices = @transform_1, window_bounds = array<i64: 128, 128>}, {pipeline_mode = #tpu.pipeline_mode<synchronous>, transform_indices = @transform_2, window_bounds = array<i64: 128, 128>}, {pipeline_mode = #tpu.pipeline_mode<synchronous>, transform_indices = @transform_3, window_bounds = array<i64: 128, 128>}, {pipeline_mode = #tpu.pipeline_mode<synchronous>, transform_indices = @transform_4, window_bounds = array<i64: 1, 128>}, {pipeline_mode = #tpu.pipeline_mode<synchronous>, transform_indices = @transform_5, window_bounds = array<i64: 1, 128>}, {pipeline_mode = #tpu.pipeline_mode<synchronous>, transform_indices = @transform_6, window_bounds = array<i64: 1, 128>}, {transform_indices = @transform_7, window_bounds = array<i64: 2, 8, 128>}]} {
    %c0 = arith.constant 0 : index
    %c0_0 = arith.constant 0 : index
    %c0_1 = arith.constant 0 : index
    %0 = vector.load %arg1[%c0, %c0_0, %c0_1] : memref<2x8x128xf32, #tpu.memory_space<vmem>>, vector<2x8x128xf32>
    %1 = vector.shape_cast %0 : vector<2x8x128xf32> to vector<16x128xf32>
    %2 = arith.truncf %1 : vector<16x128xf32> to vector<16x128xbf16>
    %3 = arith.truncf %0 : vector<2x8x128xf32> to vector<2x8x128xbf16>
    %c0_2 = arith.constant 0 : index
    %c0_3 = arith.constant 0 : index
    %4 = vector.load %arg2[%c0_2, %c0_3] : memref<128x128xbf16, #tpu.memory_space<vmem>>, vector<128x128xbf16>
    %cst = arith.constant dense<0.000000e+00> : vector<16x128xf32>
    %5 = tpu.matmul %2, %4, %cst {dimension_numbers = #tpu.dot_dimension_numbers<[1], [0], [0], [1], [0, 0, 1, 1], [], []>} : vector<16x128xbf16>, vector<128x128xbf16>, vector<16x128xf32> -> vector<16x128xf32>
    %c0_4 = arith.constant 0 : index
    %c0_5 = arith.constant 0 : index
    %6 = vector.load %arg5[%c0_4, %c0_5] : memref<1x128xf32, #tpu.memory_space<vmem>>, vector<1x128xf32>
    %7 = vector.broadcast %6 : vector<1x128xf32> to vector<16x128xf32>
    %8 = arith.addf %5, %7 : vector<16x128xf32>
    %c0_6 = arith.constant 0 : index
    %c0_7 = arith.constant 0 : index
    %9 = vector.load %arg3[%c0_6, %c0_7] : memref<128x128xbf16, #tpu.memory_space<vmem>>, vector<128x128xbf16>
    %cst_8 = arith.constant dense<0.000000e+00> : vector<16x128xf32>
    %10 = tpu.matmul %2, %9, %cst_8 {dimension_numbers = #tpu.dot_dimension_numbers<[1], [0], [0], [1], [0, 0, 1, 1], [], []>} : vector<16x128xbf16>, vector<128x128xbf16>, vector<16x128xf32> -> vector<16x128xf32>
    %c0_9 = arith.constant 0 : index
    %c0_10 = arith.constant 0 : index
    %11 = vector.load %arg6[%c0_9, %c0_10] : memref<1x128xf32, #tpu.memory_space<vmem>>, vector<1x128xf32>
    %12 = vector.broadcast %11 : vector<1x128xf32> to vector<16x128xf32>
    %13 = arith.addf %10, %12 : vector<16x128xf32>
    %14 = vector.shape_cast %8 : vector<16x128xf32> to vector<2x8x128xf32>
    %15 = arith.truncf %14 : vector<2x8x128xf32> to vector<2x8x128xbf16>
    %16 = vector.shape_cast %13 : vector<16x128xf32> to vector<2x8x128xf32>
    %17 = arith.truncf %16 : vector<2x8x128xf32> to vector<2x8x128xbf16>
    "tpu.trace_start"() <{level = 10 : i32, message = "bld,bmd->blm"}> : () -> ()
    %cst_11 = arith.constant dense<0.000000e+00> : vector<2x8x8xf32>
    %18 = tpu.matmul %15, %17, %cst_11 {dimension_numbers = #tpu.dot_dimension_numbers<[2], [2], [1], [1], [0, 0, 0, 1, 1, 1], [0], [0]>} : vector<2x8x128xbf16>, vector<2x8x128xbf16>, vector<2x8x8xf32> -> vector<2x8x8xf32>
    "tpu.trace_stop"() : () -> ()
    %cst_12 = arith.constant dense<0xFF800000> : vector<2x8xf32>
    %19 = vector.multi_reduction <maximumf>, %18, %cst_12 [2] : vector<2x8x8xf32> to vector<2x8xf32>
    %20 = vector.shape_cast %19 : vector<2x8xf32> to vector<2x8x1xf32>
    %21 = vector.broadcast %20 : vector<2x8x1xf32> to vector<2x8x8xf32>
    %22 = arith.subf %18, %21 : vector<2x8x8xf32>
    %23 = math.exp %22 : vector<2x8x8xf32>
    %cst_13 = arith.constant dense<0.000000e+00> : vector<2x8xf32>
    %24 = vector.multi_reduction <add>, %23, %cst_13 [2] : vector<2x8x8xf32> to vector<2x8xf32>
    %25 = vector.shape_cast %24 : vector<2x8xf32> to vector<2x8x1xf32>
    %26 = tpu.reciprocal %25 {approx = true} : vector<2x8x1xf32> -> vector<2x8x1xf32>
    %27 = arith.mulf %25, %26 : vector<2x8x1xf32>
    %cst_14 = arith.constant 2.000000e+00 : f32
    %28 = vector.broadcast %cst_14 : f32 to vector<2x8x1xf32>
    %29 = arith.subf %28, %27 : vector<2x8x1xf32>
    %30 = arith.mulf %26, %29 : vector<2x8x1xf32>
    %31 = vector.broadcast %30 : vector<2x8x1xf32> to vector<2x8x8xf32>
    %32 = arith.mulf %23, %31 : vector<2x8x8xf32>
    %33 = arith.truncf %32 : vector<2x8x8xf32> to vector<2x8x8xbf16>
    "tpu.trace_start"() <{level = 10 : i32, message = "blm,bmd->bld"}> : () -> ()
    %cst_15 = arith.constant dense<0.000000e+00> : vector<2x8x128xf32>
    %34 = tpu.matmul %33, %3, %cst_15 {dimension_numbers = #tpu.dot_dimension_numbers<[2], [1], [1], [2], [0, 0, 0, 1, 1, 2], [0], [0]>} : vector<2x8x8xbf16>, vector<2x8x128xbf16>, vector<2x8x128xf32> -> vector<2x8x128xf32>
    "tpu.trace_stop"() : () -> ()
    %35 = vector.shape_cast %34 : vector<2x8x128xf32> to vector<16x128xf32>
    %36 = arith.truncf %35 : vector<16x128xf32> to vector<16x128xbf16>
    %c0_16 = arith.constant 0 : index
    %c0_17 = arith.constant 0 : index
    %37 = vector.load %arg4[%c0_16, %c0_17] : memref<128x128xbf16, #tpu.memory_space<vmem>>, vector<128x128xbf16>
    %cst_18 = arith.constant dense<0.000000e+00> : vector<16x128xf32>
    %38 = tpu.matmul %36, %37, %cst_18 {dimension_numbers = #tpu.dot_dimension_numbers<[1], [0], [0], [1], [0, 0, 1, 1], [], []>} : vector<16x128xbf16>, vector<128x128xbf16>, vector<16x128xf32> -> vector<16x128xf32>
    %c0_19 = arith.constant 0 : index
    %c0_20 = arith.constant 0 : index
    %39 = vector.load %arg7[%c0_19, %c0_20] : memref<1x128xf32, #tpu.memory_space<vmem>>, vector<1x128xf32>
    %40 = vector.broadcast %39 : vector<1x128xf32> to vector<16x128xf32>
    %41 = arith.addf %38, %40 : vector<16x128xf32>
    %cst_21 = arith.constant 0.000000e+00 : f32
    %42 = vector.broadcast %cst_21 : f32 to vector<16x128xf32>
    %43 = arith.maximumf %41, %42 : vector<16x128xf32>
    %44 = vector.shape_cast %43 : vector<16x128xf32> to vector<2x8x128xf32>
    %c0_22 = arith.constant 0 : index
    %c0_23 = arith.constant 0 : index
    %c0_24 = arith.constant 0 : index
    %45 = vector.load %arg8[%c0_22, %c0_23, %c0_24] : memref<2x8x128xf32, #tpu.memory_space<vmem>>, vector<2x8x128xf32>
    tpu.vector_store %arg8[%c0_22, %c0_23, %c0_24], %44 {strides = array<i32>} : memref<2x8x128xf32, #tpu.memory_space<vmem>>, vector<2x8x128xf32>,
    return
  }
  func.func @transform_0(%arg0: i32) -> (i32, i32, i32) {
    %c0_i32 = arith.constant 0 : i32
    %c0_i32_0 = arith.constant 0 : i32
    %c0_i32_1 = arith.constant 0 : i32
    return %arg0, %c0_i32, %c0_i32_0 : i32, i32, i32
  }
  func.func @transform_1(%arg0: i32) -> (i32, i32) {
    %c0_i32 = arith.constant 0 : i32
    %c0_i32_0 = arith.constant 0 : i32
    %c0_i32_1 = arith.constant 0 : i32
    return %c0_i32, %c0_i32_0 : i32, i32
  }
  func.func @transform_2(%arg0: i32) -> (i32, i32) {
    %c0_i32 = arith.constant 0 : i32
    %c0_i32_0 = arith.constant 0 : i32
    %c0_i32_1 = arith.constant 0 : i32
    return %c0_i32, %c0_i32_0 : i32, i32
  }
  func.func @transform_3(%arg0: i32) -> (i32, i32) {
    %c0_i32 = arith.constant 0 : i32
    %c0_i32_0 = arith.constant 0 : i32
    %c0_i32_1 = arith.constant 0 : i32
    return %c0_i32, %c0_i32_0 : i32, i32
  }
  func.func @transform_4(%arg0: i32) -> (i32, i32) {
    %c0_i32 = arith.constant 0 : i32
    %c0_i32_0 = arith.constant 0 : i32
    %c0_i32_1 = arith.constant 0 : i32
    return %c0_i32, %c0_i32_0 : i32, i32
  }
  func.func @transform_5(%arg0: i32) -> (i32, i32) {
    %c0_i32 = arith.constant 0 : i32
    %c0_i32_0 = arith.constant 0 : i32
    %c0_i32_1 = arith.constant 0 : i32
    return %c0_i32, %c0_i32_0 : i32, i32
  }
  func.func @transform_6(%arg0: i32) -> (i32, i32) {
    %c0_i32 = arith.constant 0 : i32
    %c0_i32_0 = arith.constant 0 : i32
    %c0_i32_1 = arith.constant 0 : i32
    return %c0_i32, %c0_i32_0 : i32, i32
  }
  func.func @transform_7(%arg0: i32) -> (i32, i32, i32) {
    %c0_i32 = arith.constant 0 : i32
    %c0_i32_0 = arith.constant 0 : i32
    %c0_i32_1 = arith.constant 0 : i32
    return %arg0, %c0_i32, %c0_i32_0 : i32, i32, i32
  }
}

</mosaic_0001>

<llo_original>
// kernel: tpu_custom_call.1
$region0: #{tpu_custom_call.1}
  #allocation0 [shape = 'u32[]', space=smem, size = 0x4, offset = 0x4, fixed_abs, tag = 'smem constant byte address 0x4 - core index']
  #allocation1 [shape = 'u32[144,128]{1,0:T(1,128)}', space=vmem, size = 0x12000, scoped, tag = 'internal scratch']
  %s0 = inlined_call_operand.hbm [shape: f32[4,8,128], index: 0, kind: input, shape index: {}]
  %s1 = inlined_call_operand.hbm [shape: bf16[128,128], index: 1, kind: input, shape index: {}]
  %s2 = inlined_call_operand.hbm [shape: bf16[128,128], index: 2, kind: input, shape index: {}]
  %s3 = inlined_call_operand.hbm [shape: bf16[128,128], index: 3, kind: input, shape index: {}]
  %s4 = inlined_call_operand.vmem [shape: f32[1,128], index: 4, kind: input, shape index: {}]
  %s5 = inlined_call_operand.vmem [shape: f32[1,128], index: 5, kind: input, shape index: {}]
  %s6 = inlined_call_operand.vmem [shape: f32[1,128], index: 6, kind: input, shape index: {}]
  %s7 = inlined_call_operand.hbm [shape: f32[4,8,128], index: 7, kind: output, shape index: {}]
  %s8 = sld [smem:[#allocation0]]
  $region77: #{tpu_custom_call.1} parent=0
    _
  %s10 = ssub.s32 1, %s8
  %s11 = scalar_select 0, %s10, %s8
  $region1: #{tpu_custom_call.1} parent=0
    #allocation2 [shape = 'u8[16384]{0}', space=vmem, size = 0x4000, scoped, tag = 'input window, operand 0']
    #allocation3 [shape = 's32[2]{0}', space=sflag, size = 0x8, scoped, tag = 'scoped memory for tpu_custom_call.1']
    #allocation4 [shape = 's32[2]{0}', space=sflag, size = 0x8, scoped, tag = 'scoped memory for tpu_custom_call.1']
    #allocation5 [shape = 'u8[32768]{0}', space=vmem, size = 0x8000, scoped, tag = 'input window, operand 1, single buffered']
    #allocation6 [shape = 's32[1]{0}', space=sflag, size = 0x4, scoped, tag = 'scoped memory for tpu_custom_call.1']
    #allocation7 [shape = 'u8[32768]{0}', space=vmem, size = 0x8000, scoped, tag = 'input window, operand 2, single buffered']
    #allocation8 [shape = 'u8[32768]{0}', space=vmem, size = 0x8000, scoped, tag = 'input window, operand 3, single buffered']
    #allocation9 [shape = 's32[1]{0}', space=sflag, size = 0x4, scoped, tag = 'scoped memory for tpu_custom_call.1']
    #allocation10 [shape = 'u8[16384]{0}', space=vmem, size = 0x4000, scoped, tag = 'output window, operand 0']
    %12 = vsyncpa [#allocation3], 0
    %s13 = scalar_lea.sflag [#allocation3], 1
    %14 = vsyncpa %s13, 0
    %15 = vsyncpa [#allocation6], 0
    %16 = vsyncpa [#allocation9], 0
    %17 = vsyncpa [#allocation4], 0
    %s18 = scalar_lea.sflag [#allocation4], 1
    %19 = vsyncpa %s18, 0
    loop: start=0, step=1, limit=4
    $region2: #{tpu_custom_call.1} parent=1 // loop_pre_header
      _
    $region3: #{tpu_custom_call.1} parent=1 // loop_header
      %s21 = sphi 0, %s25
      %p22 = scmp.ge.s32.totalorder %s21, 4
      %s31 = sphi 0, %s33
      %s34 = sphi 0, %s31
      %s35 = sphi 0, %s34
      %s51 = sphi 0, %s35
      %s55 = sphi 0, %s55
      %s57 = sphi 0, %s55
      %s58 = sphi 0, %s57
      %s72 = sphi 0, %s58
      %s76 = sphi 0, %s76
      %s78 = sphi 0, %s76
      %s79 = sphi 0, %s78
      %s93 = sphi 0, %s79
      %s97 = sphi 0, %s97
      %s99 = sphi 0, %s97
      %s100 = sphi 0, %s99
      %s114 = sphi 0, %s100
      %s118 = sphi 0, %s118
      %s120 = sphi 0, %s118
      %s121 = sphi 0, %s120
      %s135 = sphi 0, %s121
      %s139 = sphi 0, %s139
      %s141 = sphi 0, %s139
      %s142 = sphi 0, %s141
      %s156 = sphi 0, %s142
      %s160 = sphi 0, %s160
      %s162 = sphi 0, %s160
      %s163 = sphi 0, %s162
      %s177 = sphi 0, %s163
      %s183 = sphi 0, %s185
      %s186 = sphi 0, %s183
      %s187 = sphi 0, %s186
      %s203 = sphi 0, %s187
    $region4: #{tpu_custom_call.1} parent=1 // loop_header_branch
      %24 = sbr.rel (%p22) target = $region8
    $region5: #{tpu_custom_call.1} parent=1 // loop_body
      %s26 = ssub.s32 %s21, 1
      %s27 = ssub.s32 %s21, 2
      %s28 = sadd.s32 %s21, 1
      %s29 = ssub.s32 %s21, %s28
      %p30 = scmp.eq.s32.totalorder %s29, 0
      %s32 = sadd.s32 %s31, 1
      %s33 = scalar_select %p30, %s31, %s32
      %p36 = pneg %p30
      %p37 = scmp.eq.s32.totalorder %s21, 1
      %p38 = por %p36, %p37
      %p39 = scmp.ne.s32.totalorder %s31, %s34
      %p40 = scmp.eq.s32.totalorder %s21, 0
      %p41 = por %p39, %p40
      %p42 = scmp.ne.s32.totalorder %s31, %s34
      %p43 = scmp.eq.s32.totalorder %s26, 1
      %p44 = por %p42, %p43
      %p45 = scmp.ne.s32.totalorder %s34, %s35
      %p46 = scmp.eq.s32.totalorder %s26, 0
      %p47 = por %p45, %p46
      %p48 = scmp.ne.s32.totalorder %s34, %s35
      %p49 = scmp.eq.s32.totalorder %s27, 1
      %p50 = por %p48, %p49
      %p52 = scmp.ne.s32.totalorder %s35, %s51
      %p53 = scmp.eq.s32.totalorder %s27, 0
      %p54 = por %p52, %p53
      %s56 = sadd.s32 %s55, 1
      %p59 = scmp.eq.s32.totalorder %s21, 1
      %p60 = scmp.ne.s32.totalorder %s55, %s57
      %p61 = scmp.eq.s32.totalorder %s21, 0
      %p62 = por %p60, %p61
      %p63 = scmp.ne.s32.totalorder %s55, %s57
      %p64 = scmp.eq.s32.totalorder %s26, 1
      %p65 = por %p63, %p64
      %p66 = scmp.ne.s32.totalorder %s57, %s58
      %p67 = scmp.eq.s32.totalorder %s26, 0
      %p68 = por %p66, %p67
      %p69 = scmp.ne.s32.totalorder %s57, %s58
      %p70 = scmp.eq.s32.totalorder %s27, 1
      %p71 = por %p69, %p70
      %p73 = scmp.ne.s32.totalorder %s58, %s72
      %p74 = scmp.eq.s32.totalorder %s27, 0
      %p75 = por %p73, %p74
      %s77 = sadd.s32 %s76, 1
      %p80 = scmp.eq.s32.totalorder %s21, 1
      %p81 = scmp.ne.s32.totalorder %s76, %s78
      %p82 = scmp.eq.s32.totalorder %s21, 0
      %p83 = por %p81, %p82
      %p84 = scmp.ne.s32.totalorder %s76, %s78
      %p85 = scmp.eq.s32.totalorder %s26, 1
      %p86 = por %p84, %p85
      %p87 = scmp.ne.s32.totalorder %s78, %s79
      %p88 = scmp.eq.s32.totalorder %s26, 0
      %p89 = por %p87, %p88
      %p90 = scmp.ne.s32.totalorder %s78, %s79
      %p91 = scmp.eq.s32.totalorder %s27, 1
      %p92 = por %p90, %p91
      %p94 = scmp.ne.s32.totalorder %s79, %s93
      %p95 = scmp.eq.s32.totalorder %s27, 0
      %p96 = por %p94, %p95
      %s98 = sadd.s32 %s97, 1
      %p101 = scmp.eq.s32.totalorder %s21, 1
      %p102 = scmp.ne.s32.totalorder %s97, %s99
      %p103 = scmp.eq.s32.totalorder %s21, 0
      %p104 = por %p102, %p103
      %p105 = scmp.ne.s32.totalorder %s97, %s99
      %p106 = scmp.eq.s32.totalorder %s26, 1
      %p107 = por %p105, %p106
      %p108 = scmp.ne.s32.totalorder %s99, %s100
      %p109 = scmp.eq.s32.totalorder %s26, 0
      %p110 = por %p108, %p109
      %p111 = scmp.ne.s32.totalorder %s99, %s100
      %p112 = scmp.eq.s32.totalorder %s27, 1
      %p113 = por %p111, %p112
      %p115 = scmp.ne.s32.totalorder %s100, %s114
      %p116 = scmp.eq.s32.totalorder %s27, 0
      %p117 = por %p115, %p116
      %s119 = sadd.s32 %s118, 1
      %p122 = scmp.eq.s32.totalorder %s21, 1
      %p123 = scmp.ne.s32.totalorder %s118, %s120
      %p124 = scmp.eq.s32.totalorder %s21, 0
      %p125 = por %p123, %p124
      %p126 = scmp.ne.s32.totalorder %s118, %s120
      %p127 = scmp.eq.s32.totalorder %s26, 1
      %p128 = por %p126, %p127
      %p129 = scmp.ne.s32.totalorder %s120, %s121
      %p130 = scmp.eq.s32.totalorder %s26, 0
      %p131 = por %p129, %p130
      %p132 = scmp.ne.s32.totalorder %s120, %s121
      %p133 = scmp.eq.s32.totalorder %s27, 1
      %p134 = por %p132, %p133
      %p136 = scmp.ne.s32.totalorder %s121, %s135
      %p137 = scmp.eq.s32.totalorder %s27, 0
      %p138 = por %p136, %p137
      %s140 = sadd.s32 %s139, 1
      %p143 = scmp.eq.s32.totalorder %s21, 1
      %p144 = scmp.ne.s32.totalorder %s139, %s141
      %p145 = scmp.eq.s32.totalorder %s21, 0
      %p146 = por %p144, %p145
      %p147 = scmp.ne.s32.totalorder %s139, %s141
      %p148 = scmp.eq.s32.totalorder %s26, 1
      %p149 = por %p147, %p148
      %p150 = scmp.ne.s32.totalorder %s141, %s142
      %p151 = scmp.eq.s32.totalorder %s26, 0
      %p152 = por %p150, %p151
      %p153 = scmp.ne.s32.totalorder %s141, %s142
      %p154 = scmp.eq.s32.totalorder %s27, 1
      %p155 = por %p153, %p154
      %p157 = scmp.ne.s32.totalorder %s142, %s156
      %p158 = scmp.eq.s32.totalorder %s27, 0
      %p159 = por %p157, %p158
      %s161 = sadd.s32 %s160, 1
      %p164 = scmp.eq.s32.totalorder %s21, 1
      %p165 = scmp.ne.s32.totalorder %s160, %s162
      %p166 = scmp.eq.s32.totalorder %s21, 0
      %p167 = por %p165, %p166
      %p168 = scmp.ne.s32.totalorder %s160, %s162
      %p169 = scmp.eq.s32.totalorder %s26, 1
      %p170 = por %p168, %p169
      %p171 = scmp.ne.s32.totalorder %s162, %s163
      %p172 = scmp.eq.s32.totalorder %s26, 0
      %p173 = por %p171, %p172
      %p174 = scmp.ne.s32.totalorder %s162, %s163
      %p175 = scmp.eq.s32.totalorder %s27, 1
      %p176 = por %p174, %p175
      %p178 = scmp.ne.s32.totalorder %s163, %s177
      %p179 = scmp.eq.s32.totalorder %s27, 0
      %p180 = por %p178, %p179
      %s181 = ssub.s32 %s21, %s28
      %p182 = scmp.eq.s32.totalorder %s181, 0
      %s184 = sadd.s32 %s183, 1
      %s185 = scalar_select %p182, %s183, %s184
      %p188 = pneg %p182
      %p189 = scmp.eq.s32.totalorder %s21, 1
      %p190 = por %p188, %p189
      %p191 = scmp.ne.s32.totalorder %s183, %s186
      %p192 = scmp.eq.s32.totalorder %s21, 0
      %p193 = por %p191, %p192
      %p194 = scmp.ne.s32.totalorder %s183, %s186
      %p195 = scmp.eq.s32.totalorder %s26, 1
      %p196 = por %p194, %p195
      %p197 = scmp.ne.s32.totalorder %s186, %s187
      %p198 = scmp.eq.s32.totalorder %s26, 0
      %p199 = por %p197, %p198
      %p200 = scmp.ne.s32.totalorder %s186, %s187
      %p201 = scmp.eq.s32.totalorder %s27, 1
      %p202 = por %p200, %p201
      %p204 = scmp.ne.s32.totalorder %s187, %s203
      %p205 = scmp.eq.s32.totalorder %s27, 0
      %p206 = por %p204, %p205
      %p207 = scmp.le.s32.totalorder 1, %s21
      %p208 = scmp.lt.s32.totalorder %s21, 3
      %p209 = pnand %p207, %p208
      %p210 = pneg %p209
      // Predicated region
      $region9: #{tpu_custom_call.1} parent=5 // pred_check
        _
      $region10: #{tpu_custom_call.1} parent=5 // pred_check_branch
        %212 = sbr.rel (%p209) target = $region12
      $region11: #{tpu_custom_call.1} parent=5 // pred_region
        %s213 = ssub.s32 %s21, 1
        // Predicated region
        $region13: #{tpu_custom_call.1} parent=11 // pred_check
          %p214 = pneg %p68
        $region14: #{tpu_custom_call.1} parent=11 // pred_check_branch
          %216 = sbr.rel (%p214) target = $region16
        $region15: #{tpu_custom_call.1} parent=11 // pred_region
          %s218 = ssub.s32 1024, 1024
          %219 = vsyncadd [#allocation6], %s218
          %s220 = sshll.u32 [#allocation5], 4
          %s221 = int_to_ptr.vmem [resolvable:$true] %s220
          %226 = dma.hbm_to_vmem [thread:$0]  %s1, 1024, %s221, [#allocation6], 64, 64, 4
        $region16: #{tpu_custom_call.1} parent=11 // pred_fallthru
          _
        // Predicated region
        $region17: #{tpu_custom_call.1} parent=11 // pred_check
          %p227 = pneg %p89
        $region18: #{tpu_custom_call.1} parent=11 // pred_check_branch
          %229 = sbr.rel (%p227) target = $region20
        $region19: #{tpu_custom_call.1} parent=11 // pred_region
          %s231 = ssub.s32 1024, 1024
          %232 = vsyncadd [#allocation6], %s231
          %s233 = sshll.u32 [#allocation7], 4
          %s234 = int_to_ptr.vmem [resolvable:$true] %s233
          %239 = dma.hbm_to_vmem [thread:$0]  %s2, 1024, %s234, [#allocation6], 64, 64, 4
        $region20: #{tpu_custom_call.1} parent=11 // pred_fallthru
          _
        // Predicated region
        $region21: #{tpu_custom_call.1} parent=11 // pred_check
          %p240 = pneg %p110
        $region22: #{tpu_custom_call.1} parent=11 // pred_check_branch
          %242 = sbr.rel (%p240) target = $region24
        $region23: #{tpu_custom_call.1} parent=11 // pred_region
          %s244 = ssub.s32 1024, 1024
          %245 = vsyncadd [#allocation9], %s244
          %s246 = sshll.u32 [#allocation8], 4
          %s247 = int_to_ptr.vmem [resolvable:$true] %s246
          %252 = dma.hbm_to_vmem [thread:$0]  %s3, 1024, %s247, [#allocation9], 64, 64, 4
        $region24: #{tpu_custom_call.1} parent=11 // pred_fallthru
          _
        // Predicated region
        $region25: #{tpu_custom_call.1} parent=11 // pred_check
          %p253 = pneg %p131
        $region26: #{tpu_custom_call.1} parent=11 // pred_check_branch
          %255 = sbr.rel (%p253) target = $region28
        $region27: #{tpu_custom_call.1} parent=11 // pred_region
          _
        $region28: #{tpu_custom_call.1} parent=11 // pred_fallthru
          _
        // Predicated region
        $region29: #{tpu_custom_call.1} parent=11 // pred_check
          %p256 = pneg %p152
        $region30: #{tpu_custom_call.1} parent=11 // pred_check_branch
          %258 = sbr.rel (%p256) target = $region32
        $region31: #{tpu_custom_call.1} parent=11 // pred_region
          _
        $region32: #{tpu_custom_call.1} parent=11 // pred_fallthru
          _
        // Predicated region
        $region33: #{tpu_custom_call.1} parent=11 // pred_check
          %p259 = pneg %p173
        $region34: #{tpu_custom_call.1} parent=11 // pred_check_branch
          %261 = sbr.rel (%p259) target = $region36
        $region35: #{tpu_custom_call.1} parent=11 // pred_region
          _
        $region36: #{tpu_custom_call.1} parent=11 // pred_fallthru
          _
      $region12: #{tpu_custom_call.1} parent=5 // pred_fallthru
        _
      %p262 = scmp.lt.s32.totalorder %s21, 2
      // Predicated region
      $region37: #{tpu_custom_call.1} parent=5 // pred_check
        %p263 = pneg %p262
      $region38: #{tpu_custom_call.1} parent=5 // pred_check_branch
        %265 = sbr.rel (%p263) target = $region40
      $region39: #{tpu_custom_call.1} parent=5 // pred_region
        // Predicated region
        $region41: #{tpu_custom_call.1} parent=39 // pred_check
          %p266 = pneg %p41
        $region42: #{tpu_custom_call.1} parent=39 // pred_check_branch
          %268 = sbr.rel (%p266) target = $region44
        $region43: #{tpu_custom_call.1} parent=39 // pred_region
          %s269 = sand.u32 %s31, 1
          %s270 = scalar_lea.sflag [#allocation3], %s269
          %s271 = sand.u32 %s31, 1
          %s272 = smul.addr %s271, 16
          %s273 = scalar_lea.vmem [#allocation2], %s272
          %s274 = smul.u32 2, %s21
          %s276 = ssub.s32 256, 256
          %277 = vsyncadd %s270, %s276
          %s278 = smul.addr %s274, 128
          %s279 = scalar_lea.hbm %s0, %s278
          %s280 = sshll.u32 %s273, 4
          %s281 = int_to_ptr.vmem [resolvable:$true] %s280
          %286 = dma.hbm_to_vmem [thread:$0]  %s279, 256, %s281, %s270, 128, 128, 8
        $region44: #{tpu_custom_call.1} parent=39 // pred_fallthru
          _
      $region40: #{tpu_custom_call.1} parent=5 // pred_fallthru
        _
      %p287 = scmp.le.s32.totalorder 1, %s21
      %p288 = scmp.lt.s32.totalorder %s21, 3
      %p289 = pnand %p287, %p288
      %p290 = pneg %p289
      // Predicated region
      $region45: #{tpu_custom_call.1} parent=5 // pred_check
        _
      $region46: #{tpu_custom_call.1} parent=5 // pred_check_branch
        %292 = sbr.rel (%p289) target = $region48
      $region47: #{tpu_custom_call.1} parent=5 // pred_region
        %s293 = ssub.s32 %s21, 1
        %s294 = sand.u32 %s34, 1
        %s295 = scalar_lea.sflag [#allocation3], %s294
        %s296 = sand.u32 %s34, 1
        %s297 = smul.addr %s296, 16
        %s298 = scalar_lea.vmem [#allocation2], %s297
        // Predicated region
        $region49: #{tpu_custom_call.1} parent=47 // pred_check
          %p299 = pneg %p47
        $region50: #{tpu_custom_call.1} parent=47 // pred_check_branch
          %301 = sbr.rel (%p299) target = $region52
        $region51: #{tpu_custom_call.1} parent=47 // pred_region
          %302 = dma.done %s295, 256
        $region52: #{tpu_custom_call.1} parent=47 // pred_fallthru
          _
        // Predicated region
        $region53: #{tpu_custom_call.1} parent=47 // pred_check
          %p303 = pneg %p68
        $region54: #{tpu_custom_call.1} parent=47 // pred_check_branch
          %305 = sbr.rel (%p303) target = $region56
        $region55: #{tpu_custom_call.1} parent=47 // pred_region
          %306 = dma.done [#allocation6], 1024
        $region56: #{tpu_custom_call.1} parent=47 // pred_fallthru
          _
        // Predicated region
        $region57: #{tpu_custom_call.1} parent=47 // pred_check
          %p307 = pneg %p89
        $region58: #{tpu_custom_call.1} parent=47 // pred_check_branch
          %309 = sbr.rel (%p307) target = $region60
        $region59: #{tpu_custom_call.1} parent=47 // pred_region
          %310 = dma.done [#allocation6], 1024
        $region60: #{tpu_custom_call.1} parent=47 // pred_fallthru
          _
        // Predicated region
        $region61: #{tpu_custom_call.1} parent=47 // pred_check
          %p311 = pneg %p110
        $region62: #{tpu_custom_call.1} parent=47 // pred_check_branch
          %313 = sbr.rel (%p311) target = $region64
        $region63: #{tpu_custom_call.1} parent=47 // pred_region
          %314 = dma.done [#allocation9], 1024
        $region64: #{tpu_custom_call.1} parent=47 // pred_fallthru
          _
        %s315 = sand.u32 %s34, 1
        %s316 = scalar_lea.sflag [#allocation3], %s315
        %s317 = sand.u32 %s34, 1
        %s318 = smul.addr %s317, 16
        %s319 = scalar_lea.vmem [#allocation2], %s318
        %p320 = pneg %p47
        %p321 = pneg %p44
        %p322 = pneg %p68
        %p323 = pneg %p65
        %p324 = pneg %p89
        %p325 = pneg %p86
        %p326 = pneg %p110
        %p327 = pneg %p107
        %p328 = pneg %p131
        %p329 = pneg %p128
        %p330 = pneg %p152
        %p331 = pneg %p149
        %p332 = pneg %p173
        %p333 = pneg %p170
        %p334 = pneg %p199
        %p335 = pneg %p196
        %s336 = sand.u32 %s186, 1
        %s337 = scalar_lea.sflag [#allocation4], %s336
        %s338 = sand.u32 %s186, 1
        %s339 = smul.addr %s338, 16
        %s340 = scalar_lea.vmem [#allocation10], %s339
        %s341 = smul.u32 2, %s26
        %s342 = smul.u32 2, %s26
        %v344 = vld [vmem:[%s298] sm:$0xff]
        %v345 = vld [vmem:[%s298 + $0x8] sm:$0xff]
        %v346 = vpack.c.bf16 %v345, %v344
        %v347 = vpack.c.bf16 %v344, %v344
        %v348 = vpack.c.bf16 %v345, %v345
        %v349 = vld [vmem:[#allocation5] sm:$0xf]
        %v350 = vld [vmem:[#allocation5 + $0x4] sm:$0xf]
        %v351 = vld [vmem:[#allocation5 + $0x8] sm:$0xf]
        %v352 = vld [vmem:[#allocation5 + $0xc] sm:$0xf]
        %v353 = vld [vmem:[#allocation5 + $0x10] sm:$0xf]
        %v354 = vld [vmem:[#allocation5 + $0x14] sm:$0xf]
        %v355 = vld [vmem:[#allocation5 + $0x18] sm:$0xf]
        %v356 = vld [vmem:[#allocation5 + $0x1c] sm:$0xf]
        %v357 = vld [vmem:[#allocation5 + $0x20] sm:$0xf]
        %v358 = vld [vmem:[#allocation5 + $0x24] sm:$0xf]
        %v359 = vld [vmem:[#allocation5 + $0x28] sm:$0xf]
        %v360 = vld [vmem:[#allocation5 + $0x2c] sm:$0xf]
        %v361 = vld [vmem:[#allocation5 + $0x30] sm:$0xf]
        %v362 = vld [vmem:[#allocation5 + $0x34] sm:$0xf]
        %v363 = vld [vmem:[#allocation5 + $0x38] sm:$0xf]
        %v364 = vld [vmem:[#allocation5 + $0x3c] sm:$0xf]
        %v365 = vld [vmem:[%s4] sm:$0x1]
        %v367 = vlaneseq
        %v368 = vshrl.u32 %v367, 7
        %v369 = vsub.s32 0, %v368
        %v370 = vrot.slane %v365, %v369
        %v388 = vunpack.c.l.b16 %v349
        %v389 = vunpack.c.l.b16 %v350
        %v390 = vunpack.c.l.b16 %v351
        %v391 = vunpack.c.l.b16 %v352
        %v392 = vunpack.c.l.b16 %v353
        %v393 = vunpack.c.l.b16 %v354
        %v394 = vunpack.c.l.b16 %v355
        %v395 = vunpack.c.l.b16 %v356
        %v396 = vunpack.c.l.b16 %v357
        %v397 = vunpack.c.l.b16 %v358
        %v398 = vunpack.c.l.b16 %v359
        %v399 = vunpack.c.l.b16 %v360
        %v400 = vunpack.c.l.b16 %v361
        %v401 = vunpack.c.l.b16 %v362
        %v402 = vunpack.c.l.b16 %v363
        %v403 = vunpack.c.l.b16 %v364
        %v404 = vpack.c.b16 %v389, %v388
        %v405 = vpack.c.b16 %v391, %v390
        %v406 = vpack.c.b16 %v393, %v392
        %v407 = vpack.c.b16 %v395, %v394
        %v408 = vpack.c.b16 %v397, %v396
        %v409 = vpack.c.b16 %v399, %v398
        %v410 = vpack.c.b16 %v401, %v400
        %v411 = vpack.c.b16 %v403, %v402
        %420 = vmatprep.subr.bf16.mxu0 0
        %421 = vmatpush1.bf16.msra.mxu0 %v404
        %422 = vmatprep.subr.bf16.mxu0 0
        %423 = vmatpush1.bf16.msra.mxu0 %v405
        %424 = vmatprep.subr.bf16.mxu0 0
        %425 = vmatpush1.bf16.msra.mxu0 %v406
        %426 = vmatprep.subr.bf16.mxu0 0
        %427 = vmatpush1.bf16.msra.mxu0 %v407
        %428 = vmatprep.subr.bf16.mxu0 0
        %429 = vmatpush1.bf16.msra.mxu0 %v408
        %430 = vmatprep.subr.bf16.mxu0 0
        %431 = vmatpush1.bf16.msra.mxu0 %v409
        %432 = vmatprep.subr.bf16.mxu0 0
        %433 = vmatpush1.bf16.msra.mxu0 %v410
        %434 = vmatprep.subr.bf16.mxu0 0
        %435 = vmatpush1.bf16.msra.mxu0 %v411
        %436 = vmatprep.subr.bf16.mxu0 0
        %437 = vmatpush1.bf16.msra.mxu0 0
        %438 = vmatprep.subr.bf16.mxu0 0
        %439 = vmatpush1.bf16.msra.mxu0 0
        %440 = vmatprep.subr.bf16.mxu0 0
        %441 = vmatpush1.bf16.msra.mxu0 0
        %442 = vmatprep.subr.bf16.mxu0 0
        %443 = vmatpush1.bf16.msra.mxu0 0
        %444 = vmatprep.subr.bf16.mxu0 0
        %445 = vmatpush1.bf16.msra.mxu0 0
        %446 = vmatprep.subr.bf16.mxu0 0
        %447 = vmatpush1.bf16.msra.mxu0 0
        %448 = vmatprep.subr.bf16.mxu0 0
        %449 = vmatpush1.bf16.msra.mxu0 0
        %450 = vmatprep.subr.bf16.mxu0 0
        %451 = vmatpush1.bf16.msra.mxu0 0
        %452 = vmatprep.mubr.bf16.mxu0 0
        %453 = vmatmul.mubr.bf16.gmra.mrb[0].mxu0 %v346
        %v454 = vpop.f32.mrb[0].mxu0
        %v455 = vadd.f32 %v370, %v454
        %v456 = vpop.f32.mrb[0].mxu0
        %v457 = vpop.f32.mrb[0].mxu0
        %v458 = vadd.f32 %v370, %v457
        %v459 = vpop.f32.mrb[0].mxu0
        %460 = vdwg.mxu0
        %v461 = vld [vmem:[#allocation7] sm:$0xf]
        %v462 = vld [vmem:[#allocation7 + $0x4] sm:$0xf]
        %v463 = vld [vmem:[#allocation7 + $0x8] sm:$0xf]
        %v464 = vld [vmem:[#allocation7 + $0xc] sm:$0xf]
        %v465 = vld [vmem:[#allocation7 + $0x10] sm:$0xf]
        %v466 = vld [vmem:[#allocation7 + $0x14] sm:$0xf]
        %v467 = vld [vmem:[#allocation7 + $0x18] sm:$0xf]
        %v468 = vld [vmem:[#allocation7 + $0x1c] sm:$0xf]
        %v469 = vld [vmem:[#allocation7 + $0x20] sm:$0xf]
        %v470 = vld [vmem:[#allocation7 + $0x24] sm:$0xf]
        %v471 = vld [vmem:[#allocation7 + $0x28] sm:$0xf]
        %v472 = vld [vmem:[#allocation7 + $0x2c] sm:$0xf]
        %v473 = vld [vmem:[#allocation7 + $0x30] sm:$0xf]
        %v474 = vld [vmem:[#allocation7 + $0x34] sm:$0xf]
        %v475 = vld [vmem:[#allocation7 + $0x38] sm:$0xf]
        %v476 = vld [vmem:[#allocation7 + $0x3c] sm:$0xf]
        %v477 = vld [vmem:[%s5] sm:$0x1]
        %v479 = vlaneseq
        %v480 = vshrl.u32 %v479, 7
        %v481 = vsub.s32 0, %v480
        %v482 = vrot.slane %v477, %v481
        %v500 = vunpack.c.l.b16 %v461
        %v501 = vunpack.c.l.b16 %v462
        %v502 = vunpack.c.l.b16 %v463
        %v503 = vunpack.c.l.b16 %v464
        %v504 = vunpack.c.l.b16 %v465
        %v505 = vunpack.c.l.b16 %v466
        %v506 = vunpack.c.l.b16 %v467
        %v507 = vunpack.c.l.b16 %v468
        %v508 = vunpack.c.l.b16 %v469
        %v509 = vunpack.c.l.b16 %v470
        %v510 = vunpack.c.l.b16 %v471
        %v511 = vunpack.c.l.b16 %v472
        %v512 = vunpack.c.l.b16 %v473
        %v513 = vunpack.c.l.b16 %v474
        %v514 = vunpack.c.l.b16 %v475
        %v515 = vunpack.c.l.b16 %v476
        %v516 = vpack.c.b16 %v501, %v500
        %v517 = vpack.c.b16 %v503, %v502
        %v518 = vpack.c.b16 %v505, %v504
        %v519 = vpack.c.b16 %v507, %v506
        %v520 = vpack.c.b16 %v509, %v508
        %v521 = vpack.c.b16 %v511, %v510
        %v522 = vpack.c.b16 %v513, %v512
        %v523 = vpack.c.b16 %v515, %v514
        %532 = vmatprep.subr.bf16.mxu0 0
        %533 = vmatpush1.bf16.msra.mxu0 %v516
        %534 = vmatprep.subr.bf16.mxu0 0
        %535 = vmatpush1.bf16.msra.mxu0 %v517
        %536 = vmatprep.subr.bf16.mxu0 0
        %537 = vmatpush1.bf16.msra.mxu0 %v518
        %538 = vmatprep.subr.bf16.mxu0 0
        %539 = vmatpush1.bf16.msra.mxu0 %v519
        %540 = vmatprep.subr.bf16.mxu0 0
        %541 = vmatpush1.bf16.msra.mxu0 %v520
        %542 = vmatprep.subr.bf16.mxu0 0
        %543 = vmatpush1.bf16.msra.mxu0 %v521
        %544 = vmatprep.subr.bf16.mxu0 0
        %545 = vmatpush1.bf16.msra.mxu0 %v522
        %546 = vmatprep.subr.bf16.mxu0 0
        %547 = vmatpush1.bf16.msra.mxu0 %v523
        %548 = vmatprep.subr.bf16.mxu0 0
        %549 = vmatpush1.bf16.msra.mxu0 0
        %550 = vmatprep.subr.bf16.mxu0 0
        %551 = vmatpush1.bf16.msra.mxu0 0
        %552 = vmatprep.subr.bf16.mxu0 0
        %553 = vmatpush1.bf16.msra.mxu0 0
        %554 = vmatprep.subr.bf16.mxu0 0
        %555 = vmatpush1.bf16.msra.mxu0 0
        %556 = vmatprep.subr.bf16.mxu0 0
        %557 = vmatpush1.bf16.msra.mxu0 0
        %558 = vmatprep.subr.bf16.mxu0 0
        %559 = vmatpush1.bf16.msra.mxu0 0
        %560 = vmatprep.subr.bf16.mxu0 0
        %561 = vmatpush1.bf16.msra.mxu0 0
        %562 = vmatprep.subr.bf16.mxu0 0
        %563 = vmatpush1.bf16.msra.mxu0 0
        %564 = vmatprep.mubr.bf16.mxu0 0
        %565 = vmatmul.mubr.bf16.gmra.mrb[0].mxu0 %v346
        %v566 = vpop.f32.mrb[0].mxu0
        %v567 = vadd.f32 %v482, %v566
        %v568 = vpop.f32.mrb[0].mxu0
        %v569 = vpop.f32.mrb[0].mxu0
        %v570 = vadd.f32 %v482, %v569
        %v571 = vpop.f32.mrb[0].mxu0
        %572 = vdwg.mxu0
        %v573 = vpack.c.bf16 %v455, %v455
        %v574 = vpack.c.bf16 %v458, %v458
        %v575 = vpack.c.bf16 %v567, %v567
        %v576 = vpack.c.bf16 %v570, %v570
        %577 = vmatprep.subr.bf16.mxu0 0
        %578 = vmatpush1.bf16.xpose.msra.mxu0 %v575
        %579 = vmatprep.subr.bf16.mxu0 0
        %580 = vmatpush1.bf16.xpose.msra.mxu0 0
        %581 = vmatprep.subr.bf16.mxu0 0
        %582 = vmatpush1.bf16.xpose.msra.mxu0 0
        %583 = vmatprep.subr.bf16.mxu0 0
        %584 = vmatpush1.bf16.xpose.msra.mxu0 0
        %585 = vmatprep.subr.bf16.mxu0 0
        %586 = vmatpush1.bf16.xpose.msra.mxu0 0
        %587 = vmatprep.subr.bf16.mxu0 0
        %588 = vmatpush1.bf16.xpose.msra.mxu0 0
        %589 = vmatprep.subr.bf16.mxu0 0
        %590 = vmatpush1.bf16.xpose.msra.mxu0 0
        %591 = vmatprep.subr.bf16.mxu0 0
        %592 = vmatpush1.bf16.xpose.msra.mxu0 0
        %593 = vmatprep.subr.bf16.mxu0 0
        %594 = vmatpush1.bf16.xpose.msra.mxu0 0
        %595 = vmatprep.subr.bf16.mxu0 0
        %596 = vmatpush1.bf16.xpose.msra.mxu0 0
        %597 = vmatprep.subr.bf16.mxu0 0
        %598 = vmatpush1.bf16.xpose.msra.mxu0 0
        %599 = vmatprep.subr.bf16.mxu0 0
        %600 = vmatpush1.bf16.xpose.msra.mxu0 0
        %601 = vmatprep.subr.bf16.mxu0 0
        %602 = vmatpush1.bf16.xpose.msra.mxu0 0
        %603 = vmatprep.subr.bf16.mxu0 0
        %604 = vmatpush1.bf16.xpose.msra.mxu0 0
        %605 = vmatprep.subr.bf16.mxu0 0
        %606 = vmatpush1.bf16.xpose.msra.mxu0 0
        %607 = vmatprep.subr.bf16.mxu0 0
        %608 = vmatpush1.bf16.xpose.msra.mxu0 0
        %609 = vmatprep.mubr.bf16.mxu0 0
        %610 = vmatmul.mubr.bf16.gmra.mrb[0].mxu0 %v573
        %v611 = vpop.f32.mrb[0].mxu0
        %v612 = vadd.f32 0.0, %v611
        %v613 = vpop.f32.mrb[0].mxu0
        %v614 = vpop.f32.mrb[0].mxu0
        %v615 = vpop.f32.mrb[0].mxu0
        %616 = vdwg.mxu0
        %617 = vmatprep.subr.bf16.mxu0 0
        %618 = vmatpush1.bf16.xpose.msra.mxu0 %v576
        %619 = vmatprep.subr.bf16.mxu0 0
        %620 = vmatpush1.bf16.xpose.msra.mxu0 0
        %621 = vmatprep.subr.bf16.mxu0 0
        %622 = vmatpush1.bf16.xpose.msra.mxu0 0
        %623 = vmatprep.subr.bf16.mxu0 0
        %624 = vmatpush1.bf16.xpose.msra.mxu0 0
        %625 = vmatprep.subr.bf16.mxu0 0
        %626 = vmatpush1.bf16.xpose.msra.mxu0 0
        %627 = vmatprep.subr.bf16.mxu0 0
        %628 = vmatpush1.bf16.xpose.msra.mxu0 0
        %629 = vmatprep.subr.bf16.mxu0 0
        %630 = vmatpush1.bf16.xpose.msra.mxu0 0
        %631 = vmatprep.subr.bf16.mxu0 0
        %632 = vmatpush1.bf16.xpose.msra.mxu0 0
        %633 = vmatprep.subr.bf16.mxu0 0
        %634 = vmatpush1.bf16.xpose.msra.mxu0 0
        %635 = vmatprep.subr.bf16.mxu0 0
        %636 = vmatpush1.bf16.xpose.msra.mxu0 0
        %637 = vmatprep.subr.bf16.mxu0 0
        %638 = vmatpush1.bf16.xpose.msra.mxu0 0
        %639 = vmatprep.subr.bf16.mxu0 0
        %640 = vmatpush1.bf16.xpose.msra.mxu0 0
        %641 = vmatprep.subr.bf16.mxu0 0
        %642 = vmatpush1.bf16.xpose.msra.mxu0 0
        %643 = vmatprep.subr.bf16.mxu0 0
        %644 = vmatpush1.bf16.xpose.msra.mxu0 0
        %645 = vmatprep.subr.bf16.mxu0 0
        %646 = vmatpush1.bf16.xpose.msra.mxu0 0
        %647 = vmatprep.subr.bf16.mxu0 0
        %648 = vmatpush1.bf16.xpose.msra.mxu0 0
        %649 = vmatprep.mubr.bf16.mxu0 0
        %650 = vmatmul.mubr.bf16.gmra.mrb[0].mxu0 %v574
        %v651 = vpop.f32.mrb[0].mxu0
        %v652 = vadd.f32 0.0, %v651
        %v653 = vpop.f32.mrb[0].mxu0
        %v654 = vpop.f32.mrb[0].mxu0
        %v655 = vpop.f32.mrb[0].mxu0
        %656 = vdwg.mxu0
        %vm657 = vcmask 64512
        %v658 = vsel %vm657, %v612, -inf
        %659 = vmax.xlane.f32.xlu0 %v658
        %v660 = vpop.xlane.xlu0 %659
        %v661 = vsel %vm657, %v652, -inf
        %662 = vmax.xlane.f32.xlu0 %v661
        %v663 = vpop.xlane.xlu0 %662
        %v664 = vsub.f32 %v612, %v660
        %v665 = vsub.f32 %v652, %v663
        %v666 = vmul.f32 %v664, 1.442695
        %v667 = vpow.pop %v666
        %v668 = vmul.f32 %v665, 1.442695
        %v669 = vpow.pop %v668
        %v670 = vsel %vm657, %v667, 0.0
        %671 = vadd.xlane.f32.xlu0 %v670
        %v672 = vpop.xlane.xlu0 %671
        %v673 = vsel %vm657, %v669, 0.0
        %674 = vadd.xlane.f32.xlu0 %v673
        %v675 = vpop.xlane.xlu0 %674
        %v676 = vrcp.pop %v672
        %v677 = vrcp.pop %v675
        %v678 = vmul.f32 %v672, %v676
        %v679 = vmul.f32 %v675, %v677
        %v680 = vsub.f32 2.0, %v678
        %v681 = vsub.f32 2.0, %v679
        %v682 = vmul.f32 %v676, %v680
        %v683 = vmul.f32 %v677, %v681
        %v684 = vmul.f32 %v667, %v682
        %v685 = vmul.f32 %v669, %v683
        %v686 = vpack.c.bf16 %v684, %v684
        %v687 = vpack.c.bf16 %v685, %v685
        %v689 = vsel %vm657, %v686, 0
        %vm691 = vcmask 1043456
        %v693 = vsel %vm691, %v347, 0
        %695 = vmatprep.subr.bf16.mxu0 0
        %696 = vmatpush1.bf16.msra.mxu0 %v693
        %697 = vmatprep.subr.bf16.mxu0 0
        %698 = vmatpush1.bf16.msra.mxu0 0
        %699 = vmatprep.subr.bf16.mxu0 0
        %700 = vmatpush1.bf16.msra.mxu0 0
        %701 = vmatprep.subr.bf16.mxu0 0
        %702 = vmatpush1.bf16.msra.mxu0 0
        %703 = vmatprep.subr.bf16.mxu0 0
        %704 = vmatpush1.bf16.msra.mxu0 0
        %705 = vmatprep.subr.bf16.mxu0 0
        %706 = vmatpush1.bf16.msra.mxu0 0
        %707 = vmatprep.subr.bf16.mxu0 0
        %708 = vmatpush1.bf16.msra.mxu0 0
        %709 = vmatprep.subr.bf16.mxu0 0
        %710 = vmatpush1.bf16.msra.mxu0 0
        %711 = vmatprep.subr.bf16.mxu0 0
        %712 = vmatpush1.bf16.msra.mxu0 0
        %713 = vmatprep.subr.bf16.mxu0 0
        %714 = vmatpush1.bf16.msra.mxu0 0
        %715 = vmatprep.subr.bf16.mxu0 0
        %716 = vmatpush1.bf16.msra.mxu0 0
        %717 = vmatprep.subr.bf16.mxu0 0
        %718 = vmatpush1.bf16.msra.mxu0 0
        %719 = vmatprep.subr.bf16.mxu0 0
        %720 = vmatpush1.bf16.msra.mxu0 0
        %721 = vmatprep.subr.bf16.mxu0 0
        %722 = vmatpush1.bf16.msra.mxu0 0
        %723 = vmatprep.subr.bf16.mxu0 0
        %724 = vmatpush1.bf16.msra.mxu0 0
        %725 = vmatprep.subr.bf16.mxu0 0
        %726 = vmatpush1.bf16.msra.mxu0 0
        %727 = vmatprep.mubr.bf16.mxu0 0
        %728 = vmatmul.mubr.bf16.gmra.mrb[0].mxu0 %v689
        %v729 = vpop.f32.mrb[0].mxu0
        %v730 = vadd.f32 0.0, %v729
        %v731 = vpop.f32.mrb[0].mxu0
        %v732 = vpop.f32.mrb[0].mxu0
        %v733 = vpop.f32.mrb[0].mxu0
        %734 = vdwg.mxu0
        %v736 = vsel %vm657, %v687, 0
        %v739 = vsel %vm691, %v348, 0
        %741 = vmatprep.subr.bf16.mxu0 0
        %742 = vmatpush1.bf16.msra.mxu0 %v739
        %743 = vmatprep.subr.bf16.mxu0 0
        %744 = vmatpush1.bf16.msra.mxu0 0
        %745 = vmatprep.subr.bf16.mxu0 0
        %746 = vmatpush1.bf16.msra.mxu0 0
        %747 = vmatprep.subr.bf16.mxu0 0
        %748 = vmatpush1.bf16.msra.mxu0 0
        %749 = vmatprep.subr.bf16.mxu0 0
        %750 = vmatpush1.bf16.msra.mxu0 0
        %751 = vmatprep.subr.bf16.mxu0 0
        %752 = vmatpush1.bf16.msra.mxu0 0
        %753 = vmatprep.subr.bf16.mxu0 0
        %754 = vmatpush1.bf16.msra.mxu0 0
        %755 = vmatprep.subr.bf16.mxu0 0
        %756 = vmatpush1.bf16.msra.mxu0 0
        %757 = vmatprep.subr.bf16.mxu0 0
        %758 = vmatpush1.bf16.msra.mxu0 0
        %759 = vmatprep.subr.bf16.mxu0 0
        %760 = vmatpush1.bf16.msra.mxu0 0
        %761 = vmatprep.subr.bf16.mxu0 0
        %762 = vmatpush1.bf16.msra.mxu0 0
        %763 = vmatprep.subr.bf16.mxu0 0
        %764 = vmatpush1.bf16.msra.mxu0 0
        %765 = vmatprep.subr.bf16.mxu0 0
        %766 = vmatpush1.bf16.msra.mxu0 0
        %767 = vmatprep.subr.bf16.mxu0 0
        %768 = vmatpush1.bf16.msra.mxu0 0
        %769 = vmatprep.subr.bf16.mxu0 0
        %770 = vmatpush1.bf16.msra.mxu0 0
        %771 = vmatprep.subr.bf16.mxu0 0
        %772 = vmatpush1.bf16.msra.mxu0 0
        %773 = vmatprep.mubr.bf16.mxu0 0
        %774 = vmatmul.mubr.bf16.gmra.mrb[0].mxu0 %v736
        %v775 = vpop.f32.mrb[0].mxu0
        %v776 = vadd.f32 0.0, %v775
        %v777 = vpop.f32.mrb[0].mxu0
        %v778 = vpop.f32.mrb[0].mxu0
        %v779 = vpop.f32.mrb[0].mxu0
        %780 = vdwg.mxu0
        %v781 = vpack.c.bf16 %v776, %v730
        %v782 = vld [vmem:[#allocation8] sm:$0xf]
        %v783 = vld [vmem:[#allocation8 + $0x4] sm:$0xf]
        %v784 = vld [vmem:[#allocation8 + $0x8] sm:$0xf]
        %v785 = vld [vmem:[#allocation8 + $0xc] sm:$0xf]
        %v786 = vld [vmem:[#allocation8 + $0x10] sm:$0xf]
        %v787 = vld [vmem:[#allocation8 + $0x14] sm:$0xf]
        %v788 = vld [vmem:[#allocation8 + $0x18] sm:$0xf]
        %v789 = vld [vmem:[#allocation8 + $0x1c] sm:$0xf]
        %v790 = vld [vmem:[#allocation8 + $0x20] sm:$0xf]
        %v791 = vld [vmem:[#allocation8 + $0x24] sm:$0xf]
        %v792 = vld [vmem:[#allocation8 + $0x28] sm:$0xf]
        %v793 = vld [vmem:[#allocation8 + $0x2c] sm:$0xf]
        %v794 = vld [vmem:[#allocation8 + $0x30] sm:$0xf]
        %v795 = vld [vmem:[#allocation8 + $0x34] sm:$0xf]
        %v796 = vld [vmem:[#allocation8 + $0x38] sm:$0xf]
        %v797 = vld [vmem:[#allocation8 + $0x3c] sm:$0xf]
        %v798 = vld [vmem:[%s6] sm:$0x1]
        %v800 = vlaneseq
        %v801 = vshrl.u32 %v800, 7
        %v802 = vsub.s32 0, %v801
        %v803 = vrot.slane %v798, %v802
        %v821 = vunpack.c.l.b16 %v782
        %v822 = vunpack.c.l.b16 %v783
        %v823 = vunpack.c.l.b16 %v784
        %v824 = vunpack.c.l.b16 %v785
        %v825 = vunpack.c.l.b16 %v786
        %v826 = vunpack.c.l.b16 %v787
        %v827 = vunpack.c.l.b16 %v788
        %v828 = vunpack.c.l.b16 %v789
        %v829 = vunpack.c.l.b16 %v790
        %v830 = vunpack.c.l.b16 %v791
        %v831 = vunpack.c.l.b16 %v792
        %v832 = vunpack.c.l.b16 %v793
        %v833 = vunpack.c.l.b16 %v794
        %v834 = vunpack.c.l.b16 %v795
        %v835 = vunpack.c.l.b16 %v796
        %v836 = vunpack.c.l.b16 %v797
        %v837 = vpack.c.b16 %v822, %v821
        %v838 = vpack.c.b16 %v824, %v823
        %v839 = vpack.c.b16 %v826, %v825
        %v840 = vpack.c.b16 %v828, %v827
        %v841 = vpack.c.b16 %v830, %v829
        %v842 = vpack.c.b16 %v832, %v831
        %v843 = vpack.c.b16 %v834, %v833
        %v844 = vpack.c.b16 %v836, %v835
        %853 = vmatprep.subr.bf16.mxu0 0
        %854 = vmatpush1.bf16.msra.mxu0 %v837
        %855 = vmatprep.subr.bf16.mxu0 0
        %856 = vmatpush1.bf16.msra.mxu0 %v838
        %857 = vmatprep.subr.bf16.mxu0 0
        %858 = vmatpush1.bf16.msra.mxu0 %v839
        %859 = vmatprep.subr.bf16.mxu0 0
        %860 = vmatpush1.bf16.msra.mxu0 %v840
        %861 = vmatprep.subr.bf16.mxu0 0
        %862 = vmatpush1.bf16.msra.mxu0 %v841
        %863 = vmatprep.subr.bf16.mxu0 0
        %864 = vmatpush1.bf16.msra.mxu0 %v842
        %865 = vmatprep.subr.bf16.mxu0 0
        %866 = vmatpush1.bf16.msra.mxu0 %v843
        %867 = vmatprep.subr.bf16.mxu0 0
        %868 = vmatpush1.bf16.msra.mxu0 %v844
        %869 = vmatprep.subr.bf16.mxu0 0
        %870 = vmatpush1.bf16.msra.mxu0 0
        %871 = vmatprep.subr.bf16.mxu0 0
        %872 = vmatpush1.bf16.msra.mxu0 0
        %873 = vmatprep.subr.bf16.mxu0 0
        %874 = vmatpush1.bf16.msra.mxu0 0
        %875 = vmatprep.subr.bf16.mxu0 0
        %876 = vmatpush1.bf16.msra.mxu0 0
        %877 = vmatprep.subr.bf16.mxu0 0
        %878 = vmatpush1.bf16.msra.mxu0 0
        %879 = vmatprep.subr.bf16.mxu0 0
        %880 = vmatpush1.bf16.msra.mxu0 0
        %881 = vmatprep.subr.bf16.mxu0 0
        %882 = vmatpush1.bf16.msra.mxu0 0
        %883 = vmatprep.subr.bf16.mxu0 0
        %884 = vmatpush1.bf16.msra.mxu0 0
        %885 = vmatprep.mubr.bf16.mxu0 0
        %886 = vmatmul.mubr.bf16.gmra.mrb[0].mxu0 %v781
        %v887 = vpop.f32.mrb[0].mxu0
        %v888 = vadd.f32 %v803, %v887
        %v889 = vpop.f32.mrb[0].mxu0
        %v890 = vpop.f32.mrb[0].mxu0
        %v891 = vadd.f32 %v803, %v890
        %v892 = vpop.f32.mrb[0].mxu0
        %893 = vdwg.mxu0
        %v894 = vmax.f32 %v888, 0.0
        %v895 = vmax.f32 %v891, 0.0
        %896 = vst [vmem:[%s340] sm:$0xff] %v894
        %897 = vst [vmem:[%s340 + $0x8] sm:$0xff] %v895
        %s898 = sand.u32 %s186, 1
        %s899 = scalar_lea.sflag [#allocation4], %s898
        %s900 = sand.u32 %s186, 1
        %s901 = smul.addr %s900, 16
        %s902 = scalar_lea.vmem [#allocation10], %s901
        // Predicated region
        $region65: #{tpu_custom_call.1} parent=47 // pred_check
          %p903 = pneg %p196
        $region66: #{tpu_custom_call.1} parent=47 // pred_check_branch
          %905 = sbr.rel (%p903) target = $region68
        $region67: #{tpu_custom_call.1} parent=47 // pred_region
          %s906 = smul.u32 2, %s26
          %s908 = ssub.s32 256, 256
          %909 = vsyncadd %s899, %s908
          %s910 = smul.addr %s906, 128
          %s911 = scalar_lea.hbm %s7, %s910
          %s912 = sshll.u32 %s902, 4
          %s913 = int_to_ptr.vmem [resolvable:$true] %s912
          %918 = dma.vmem_to_hbm [thread:$0]  %s913, 256, %s911, %s899, 128, 128, 8
        $region68: #{tpu_custom_call.1} parent=47 // pred_fallthru
          _
      $region48: #{tpu_custom_call.1} parent=5 // pred_fallthru
        _
      %p919 = scmp.le.s32.totalorder 2, %s21
      // Predicated region
      $region69: #{tpu_custom_call.1} parent=5 // pred_check
        %p920 = pneg %p919
      $region70: #{tpu_custom_call.1} parent=5 // pred_check_branch
        %922 = sbr.rel (%p920) target = $region72
      $region71: #{tpu_custom_call.1} parent=5 // pred_region
        %s923 = ssub.s32 %s21, 2
        // Predicated region
        $region73: #{tpu_custom_call.1} parent=71 // pred_check
          %p924 = pneg %p202
        $region74: #{tpu_custom_call.1} parent=71 // pred_check_branch
          %926 = sbr.rel (%p924) target = $region76
        $region75: #{tpu_custom_call.1} parent=71 // pred_region
          %s927 = sand.u32 %s187, 1
          %s928 = scalar_lea.sflag [#allocation4], %s927
          %s929 = sand.u32 %s187, 1
          %s930 = smul.addr %s929, 16
          %s931 = scalar_lea.vmem [#allocation10], %s930
          %932 = dma.done %s928, 256
        $region76: #{tpu_custom_call.1} parent=71 // pred_fallthru
          _
      $region72: #{tpu_custom_call.1} parent=5 // pred_fallthru
        _
    $region6: #{tpu_custom_call.1} parent=1 // loop_footer
      %s25 = sadd.s32 1, %s21
    $region7: #{tpu_custom_call.1} parent=1 // loop_footer_branch
      %20 = sbr.rel target = $region3
    $region8: #{tpu_custom_call.1} parent=1 // loop_exit
      _
    %933 = vsyncpa [#allocation3], 1
    %s934 = scalar_lea.sflag [#allocation3], 1
    %935 = vsyncpa %s934, 1
    %936 = vsyncpa [#allocation6], 1
    %937 = vsyncpa [#allocation9], 1
    %938 = vsyncpa [#allocation4], 1
    %s939 = scalar_lea.sflag [#allocation4], 1
    %940 = vsyncpa %s939, 1

</llo_original>
